<compile_context>
chip_gen: v7x
topology: tpu7x:2x2x1
jax: 0.10.0
libtpu: 0.0.40
codegen_flags: <defaults>
</compile_context>

<pallas_src>
import functools

import jax
import jax.numpy as jnp
from jax import lax
from jax.experimental import pallas as pl
from jax.experimental.pallas import tpu as pltpu

_LANES = 128
_SUBL = 16  # sublane multiple safe for both f32 (8) and packed bf16 (16)


def _cdiv(a, b):
    return (a + b - 1) // b


def _round_up(a, m):
    return _cdiv(a, m) * m


def _ncc_block_kernel(x_ref, y_ref, out_ref, *, block_rows, n_blocks,
                      last_valid_rows, last_n_b):
    """Per-block centered partial moments, packed into one (8,128) tile."""
    block_elems = block_rows * _LANES
    i = pl.program_id(0)

    def emit(x, y, n_b, pad_cnt):
        # x, y: (block_rows, 128) f32 where every non-real position is exact 0.
        # n_b / pad_cnt are *static* Python floats.
        sx = jnp.sum(x)
        sy = jnp.sum(y)
        mx = sx / n_b
        my = sy / n_b
        # Pass 2 over the VMEM-resident block: centered second moments.
        # NOTE: single-level f32 accumulation per block; fine at ~1M elem/block
        # (review: consider a strip-then-combine sum if blocks grow much larger).
        dx = x - mx
        dy = y - my
        m2x = jnp.sum(dx * dx)
        m2y = jnp.sum(dy * dy)
        cxy = jnp.sum(dx * dy)
        if pad_cnt:
            # Padded/masked positions are exact zeros, so each contributes
            # exactly mx*mx, my*my, mx*my to the raw sums — subtract
            # analytically instead of re-masking element-wise.
            m2x = m2x - pad_cnt * (mx * mx)
            m2y = m2y - pad_cnt * (my * my)
            cxy = cxy - pad_cnt * (mx * my)
        # Pack the 5 stats into one lane-dense (8,128) tile: sublane 0..3 hold
        # sx, sy, m2x, m2y; sublanes 4..7 hold cxy.  One unmasked vector store.
        sub = lax.broadcasted_iota(jnp.int32, (8, _LANES), 0)
        tile = jnp.where(sub == 0, sx,
               jnp.where(sub == 1, sy,
               jnp.where(sub == 2, m2x,
               jnp.where(sub == 3, m2y, cxy))))
        out_ref[0] = tile

    def emit_full():
        emit(x_ref[...].astype(jnp.float32), y_ref[...].astype(jnp.float32),
             float(block_elems), 0.0)

    def emit_boundary():
        x = x_ref[...].astype(jnp.float32)
        y = y_ref[...].astype(jnp.float32)
        if last_valid_rows < block_rows:
            # Rows past the (zero-padded) array come from Pallas boundary-block
            # padding (unspecified contents) -> force them to exact zero.
            row = lax.broadcasted_iota(jnp.int32, (block_rows, _LANES), 0)
            ok = row < last_valid_rows
            x = jnp.where(ok, x, 0.0)
            y = jnp.where(ok, y, 0.0)
        emit(x, y, float(last_n_b), float(block_elems - last_n_b))

    boundary_special = (last_valid_rows < block_rows) or (last_n_b < block_elems)
    if not boundary_special:
        # Every block is completely full of real data: zero mask work anywhere.
        emit_full()
    elif n_blocks == 1:
        emit_boundary()
    else:
        # Mask work is paid ONLY on the final block (review item: boundary-only
        # masking); interior blocks take the mask-free fast path.
        @pl.when(i < n_blocks - 1)
        def _():
            emit_full()

        @pl.when(i == n_blocks - 1)
        def _():
            emit_boundary()


def _prep_flat(a):
    """Flatten; keep bf16/f32 native (stream narrow dtypes, upcast on-chip)."""
    a = jnp.asarray(a)
    if a.dtype != jnp.bfloat16 and a.dtype != jnp.float32:
        a = a.astype(jnp.float32)
    return a.reshape(-1)


def ncc_loss(y_true, y_pred, *, target_block_bytes=4 << 20):
    """Pallas NCC loss. Accepts arrays of any (matching) shape, returns scalar.

    target_block_bytes: per-input per-grid-step DMA slab size (default 4 MiB;
    2 inputs x 2 pipeline buffers = 16 MiB, within every generation's VMEM
    once vmem_limit_bytes is raised accordingly).
    """
    assert y_true.shape == y_pred.shape

    x = _prep_flat(y_true)
    y = _prep_flat(y_pred)
    n_total = x.size
    assert 0 < n_total < 2**31  # TODO(synk): int64 indexing for >2G elements

    itemsize = x.dtype.itemsize
    rows_data = _cdiv(n_total, _LANES)

    # ---- Tile selection: biggest slab that fits the byte budget, rounded to a
    # ---- sublane-safe multiple; keep the block count even when multi-block so
    # ---- v7x's two TensorCores get a balanced "parallel" split.
    rows_cap = max(_SUBL, (target_block_bytes // (_LANES * itemsize)) // _SUBL * _SUBL)
    if rows_data <= rows_cap:
        block_rows = _round_up(rows_data, _SUBL)
    else:
        n_blocks = _cdiv(rows_data, rows_cap)
        if n_blocks % 2:
            n_blocks += 1
        block_rows = _round_up(_cdiv(rows_data, n_blocks), _SUBL)
    n_blocks = _cdiv(rows_data, block_rows)
    block_elems = block_rows * _LANES
    assert block_rows % _SUBL == 0

    # ---- Layout: lane-aligned inputs reshape copy-free; only non-128-aligned
    # ---- element counts pay a pad copy (see TODO at top of file).
    padded_len = rows_data * _LANES
    if padded_len != n_total:
        x = jnp.pad(x, (0, padded_len - n_total))
        y = jnp.pad(y, (0, padded_len - n_total))
    x2d = x.reshape(rows_data, _LANES)
    y2d = y.reshape(rows_data, _LANES)

    last_valid_rows = rows_data - (n_blocks - 1) * block_rows
    last_n_b = n_total - (n_blocks - 1) * block_elems

    kernel = functools.partial(
        _ncc_block_kernel,
        block_rows=block_rows, n_blocks=n_blocks,
        last_valid_rows=last_valid_rows, last_n_b=last_n_b)

    block_bytes = block_elems * itemsize
    vmem_limit = int(min(60 << 20, max(36 << 20, 5 * block_bytes)))

    stats = pl.pallas_call(
        kernel,
        out_shape=jax.ShapeDtypeStruct((n_blocks, 8, _LANES), jnp.float32),
        grid_spec=pltpu.PrefetchScalarGridSpec(
            num_scalar_prefetch=0,
            grid=(n_blocks,),
            in_specs=[
                pl.BlockSpec((block_rows, _LANES), lambda i: (i, 0)),
                pl.BlockSpec((block_rows, _LANES), lambda i: (i, 0)),
            ],
            out_specs=pl.BlockSpec((1, 8, _LANES), lambda i: (i, 0, 0)),
        ),
        compiler_params=pltpu.CompilerParams(
            dimension_semantics=("parallel",),     # independent blocks (2-TC split)
            vmem_limit_bytes=vmem_limit),
    )(x2d, y2d)

    # ---- Scalar epilogue in JAX: Chan-style combine of per-block centered
    # ---- moments, then the NCC formula (matches the PyTorch forward).
    sx_b = stats[:, 0, 0]
    sy_b = stats[:, 1, 0]
    m2x_b = stats[:, 2, 0]
    m2y_b = stats[:, 3, 0]
    cxy_b = stats[:, 4, 0]

    n = jnp.float32(n_total)
    n_b = jnp.minimum(
        jnp.int32(block_elems),
        jnp.int32(n_total) - jnp.arange(n_blocks, dtype=jnp.int32) * block_elems,
    ).astype(jnp.float32)

    mean_x = jnp.sum(sx_b) / n
    mean_y = jnp.sum(sy_b) / n
    dxm = sx_b / n_b - mean_x
    dym = sy_b / n_b - mean_y
    m2x = jnp.sum(m2x_b) + jnp.sum(n_b * dxm * dxm)   # sum((x - mean_x)^2)
    m2y = jnp.sum(m2y_b) + jnp.sum(n_b * dym * dym)
    cxy = jnp.sum(cxy_b) + jnp.sum(n_b * dxm * dym)   # sum((x-mx)(y-my))

    # Guard against f32 rounding of the analytic pad correction driving the
    # combined second moments slightly negative before the sqrt.
    m2x = jnp.maximum(m2x, 0.0)
    m2y = jnp.maximum(m2y, 0.0)

    nominator = cxy / n
    denominator = jnp.sqrt(m2x / (n - 1.0)) * jnp.sqrt(m2y / (n - 1.0))
    cc = (nominator + 1e-6) / (denominator + 1e-6)
    cc = jnp.clip(cc, 0.0, 1.0)
    return -cc


def _ncc_loss_ref(y_true, y_pred):
    """Pure-JAX reference matching the PyTorch forward (is_tensor=False)."""
    x = jnp.asarray(y_true, jnp.float32)
    y = jnp.asarray(y_pred, jnp.float32)
    nominator = jnp.mean((x - jnp.mean(x)) * (y - jnp.mean(y)))
    denominator = jnp.std(x, ddof=1) * jnp.std(y, ddof=1)   # torch.std unbiased
    cc = (nominator + 1e-6) / (denominator + 1e-6)
    cc = jnp.clip(cc, 0.0, 1.0)
    return -cc


if __name__ == "__main__":
    key = jax.random.PRNGKey(0)
    k1, k2, k3, k4 = jax.random.split(key, 4)

    # Primary case: NCHW image pair, lane-aligned (copy-free fast path,
    # single full block, no masking anywhere).
    y_true = jax.random.normal(k1, (2, 4, 16, 16), dtype=jnp.float32)
    y_pred = 0.7 * y_true + 0.3 * jax.random.normal(k2, (2, 4, 16, 16),
                                                    dtype=jnp.float32)
    loss = jax.block_until_ready(ncc_loss(y_true, y_pred))
    ref = jax.block_until_ready(_ncc_loss_ref(y_true, y_pred))
    assert jnp.allclose(loss, ref, rtol=1e-5, atol=1e-5), (loss, ref)

    # Ragged case: odd element count + multi-block grid whose boundary block is
    # partially out of bounds (exercises the boundary-only masking path, HBM
    # lane padding, and the two-level Chan combine) with tiny forced blocks.
    a = jax.random.normal(k3, (2, 3, 23, 31), dtype=jnp.float32)
    b = 0.5 * a + 0.5 * jax.random.normal(k4, (2, 3, 23, 31), dtype=jnp.float32)
    loss2 = jax.block_until_ready(
        ncc_loss(a, b, target_block_bytes=_SUBL * _LANES * 4))
    ref2 = jax.block_until_ready(_ncc_loss_ref(a, b))
    assert jnp.allclose(loss2, ref2, rtol=1e-5, atol=1e-5), (loss2, ref2)

    # bf16 case: inputs streamed in native bf16 (half the HBM bytes) and
    # upcast on-chip; reference computed on the identical bf16 values.
    yt16 = y_true.astype(jnp.bfloat16)
    yp16 = y_pred.astype(jnp.bfloat16)
    loss3 = jax.block_until_ready(ncc_loss(yt16, yp16))
    ref3 = jax.block_until_ready(_ncc_loss_ref(yt16, yp16))
    assert jnp.allclose(loss3, ref3, rtol=1e-4, atol=1e-4), (loss3, ref3)

    print("KERNEL_OK")
</pallas_src>

<mosaic_0001>
module attributes {stable_mosaic.version = 11 : i64} {
  func.func @_ncc_block_kernel(%arg0: i32, %arg1: memref<16x128xf32, #tpu.memory_space<vmem>>, %arg2: memref<16x128xf32, #tpu.memory_space<vmem>>, %arg3: memref<1x8x128xf32, #tpu.memory_space<vmem>>) attributes {dimension_semantics = [#tpu.dimension_semantics<parallel>], iteration_bounds = array<i64: 1>, scalar_prefetch = 0 : i64, scratch_operands = 0 : i64, tpu.core_type = #tpu.core_type<tc>, window_params = [{transform_indices = @transform_0, window_bounds = array<i64: 16, 128>}, {transform_indices = @transform_1, window_bounds = array<i64: 16, 128>}, {transform_indices = @transform_2, window_bounds = array<i64: 1, 8, 128>}]} {
    %c0 = arith.constant 0 : index
    %c0_0 = arith.constant 0 : index
    %0 = vector.load %arg1[%c0, %c0_0] : memref<16x128xf32, #tpu.memory_space<vmem>>, vector<16x128xf32>
    %c0_1 = arith.constant 0 : index
    %c0_2 = arith.constant 0 : index
    %1 = vector.load %arg2[%c0_1, %c0_2] : memref<16x128xf32, #tpu.memory_space<vmem>>, vector<16x128xf32>
    %2 = vector.shape_cast %0 : vector<16x128xf32> to vector<1x16x128xf32>
    %cst = arith.constant dense<0.000000e+00> : vector<1xf32>
    %3 = vector.multi_reduction <add>, %2, %cst [1, 2] : vector<1x16x128xf32> to vector<1xf32>
    %4 = vector.shape_cast %3 : vector<1xf32> to vector<1x1x1xf32>
    %5 = vector.extract %4[0, 0, 0] : f32 from vector<1x1x1xf32>
    %6 = vector.shape_cast %1 : vector<16x128xf32> to vector<1x16x128xf32>
    %cst_3 = arith.constant dense<0.000000e+00> : vector<1xf32>
    %7 = vector.multi_reduction <add>, %6, %cst_3 [1, 2] : vector<1x16x128xf32> to vector<1xf32>
    %8 = vector.shape_cast %7 : vector<1xf32> to vector<1x1x1xf32>
    %9 = vector.extract %8[0, 0, 0] : f32 from vector<1x1x1xf32>
    %cst_4 = arith.constant 2.048000e+03 : f32
    %10 = arith.divf %5, %cst_4 : f32
    %cst_5 = arith.constant 2.048000e+03 : f32
    %11 = arith.divf %9, %cst_5 : f32
    %12 = vector.broadcast %10 : f32 to vector<16x128xf32>
    %13 = arith.subf %0, %12 : vector<16x128xf32>
    %14 = vector.broadcast %11 : f32 to vector<16x128xf32>
    %15 = arith.subf %1, %14 : vector<16x128xf32>
    %16 = arith.mulf %13, %13 : vector<16x128xf32>
    %17 = vector.shape_cast %16 : vector<16x128xf32> to vector<1x16x128xf32>
    %cst_6 = arith.constant dense<0.000000e+00> : vector<1xf32>
    %18 = vector.multi_reduction <add>, %17, %cst_6 [1, 2] : vector<1x16x128xf32> to vector<1xf32>
    %19 = vector.shape_cast %18 : vector<1xf32> to vector<1x1x1xf32>
    %20 = vector.extract %19[0, 0, 0] : f32 from vector<1x1x1xf32>
    %21 = arith.mulf %15, %15 : vector<16x128xf32>
    %22 = vector.shape_cast %21 : vector<16x128xf32> to vector<1x16x128xf32>
    %cst_7 = arith.constant dense<0.000000e+00> : vector<1xf32>
    %23 = vector.multi_reduction <add>, %22, %cst_7 [1, 2] : vector<1x16x128xf32> to vector<1xf32>
    %24 = vector.shape_cast %23 : vector<1xf32> to vector<1x1x1xf32>
    %25 = vector.extract %24[0, 0, 0] : f32 from vector<1x1x1xf32>
    %26 = arith.mulf %13, %15 : vector<16x128xf32>
    %27 = vector.shape_cast %26 : vector<16x128xf32> to vector<1x16x128xf32>
    %cst_8 = arith.constant dense<0.000000e+00> : vector<1xf32>
    %28 = vector.multi_reduction <add>, %27, %cst_8 [1, 2] : vector<1x16x128xf32> to vector<1xf32>
    %29 = vector.shape_cast %28 : vector<1xf32> to vector<1x1x1xf32>
    %30 = vector.extract %29[0, 0, 0] : f32 from vector<1x1x1xf32>
    %31 = tpu.iota {dimensions = array<i32: 0>} : vector<8x128xi32>
    %c0_i32 = arith.constant 0 : i32
    %32 = vector.broadcast %c0_i32 : i32 to vector<8x128xi32>
    %33 = arith.cmpi eq, %31, %32 : vector<8x128xi32>
    %c1_i32 = arith.constant 1 : i32
    %34 = vector.broadcast %c1_i32 : i32 to vector<8x128xi32>
    %35 = arith.cmpi eq, %31, %34 : vector<8x128xi32>
    %c2_i32 = arith.constant 2 : i32
    %36 = vector.broadcast %c2_i32 : i32 to vector<8x128xi32>
    %37 = arith.cmpi eq, %31, %36 : vector<8x128xi32>
    %c3_i32 = arith.constant 3 : i32
    %38 = vector.broadcast %c3_i32 : i32 to vector<8x128xi32>
    %39 = arith.cmpi eq, %31, %38 : vector<8x128xi32>
    %40 = vector.broadcast %25 : f32 to vector<8x128xf32>
    %41 = vector.broadcast %30 : f32 to vector<8x128xf32>
    %42 = arith.select %39, %40, %41 : vector<8x128xi1>, vector<8x128xf32>
    %43 = vector.broadcast %20 : f32 to vector<8x128xf32>
    %44 = arith.select %37, %43, %42 : vector<8x128xi1>, vector<8x128xf32>
    %45 = vector.broadcast %9 : f32 to vector<8x128xf32>
    %46 = arith.select %35, %45, %44 : vector<8x128xi1>, vector<8x128xf32>
    %47 = vector.broadcast %5 : f32 to vector<8x128xf32>
    %48 = arith.select %33, %47, %46 : vector<8x128xi1>, vector<8x128xf32>
    %c0_9 = arith.constant 0 : index
    %c0_10 = arith.constant 0 : index
    %c0_11 = arith.constant 0 : index
    %49 = vector.load %arg3[%c0_9, %c0_10, %c0_11] : memref<1x8x128xf32, #tpu.memory_space<vmem>>, vector<1x8x128xf32>
    %50 = vector.shape_cast %49 : vector<1x8x128xf32> to vector<8x128xf32>
    %51 = vector.shape_cast %48 : vector<8x128xf32> to vector<1x8x128xf32>
    tpu.vector_store %arg3[%c0_9, %c0_10, %c0_11], %51 {strides = array<i32>} : memref<1x8x128xf32, #tpu.memory_space<vmem>>, vector<1x8x128xf32>,
    return
  }
  func.func @transform_0(%arg0: i32) -> (i32, i32) {
    %c0_i32 = arith.constant 0 : i32
    %c0_i32_0 = arith.constant 0 : i32
    return %arg0, %c0_i32 : i32, i32
  }
  func.func @transform_1(%arg0: i32) -> (i32, i32) {
    %c0_i32 = arith.constant 0 : i32
    %c0_i32_0 = arith.constant 0 : i32
    return %arg0, %c0_i32 : i32, i32
  }
  func.func @transform_2(%arg0: i32) -> (i32, i32, i32) {
    %c0_i32 = arith.constant 0 : i32
    %c0_i32_0 = arith.constant 0 : i32
    %c0_i32_1 = arith.constant 0 : i32
    return %arg0, %c0_i32, %c0_i32_0 : i32, i32, i32
  }
}

</mosaic_0001>

<llo_original>
// kernel: tpu_custom_call.1
$region0: #{tpu_custom_call.1}
  #allocation0 [shape = 'u32[]', space=smem, size = 0x4, offset = 0x4, fixed_abs, tag = 'smem constant byte address 0x4 - core index']
  #allocation1 [shape = 'u32[144,128]{1,0:T(1,128)}', space=vmem, size = 0x12000, scoped, tag = 'internal scratch']
  %s0 = inlined_call_operand.hbm [shape: f32[16,128], index: 0, kind: input, shape index: {}]
  %s1 = inlined_call_operand.hbm [shape: f32[16,128], index: 1, kind: input, shape index: {}]
  %s2 = inlined_call_operand.hbm [shape: f32[1,8,128], index: 2, kind: output, shape index: {}]
  %s3 = sld [smem:[#allocation0]]
  $region26: #{tpu_custom_call.1} parent=0
    _
  %s5 = ssub.s32 1, %s3
  %s6 = scalar_select 0, %s5, %s3
  $region1: #{tpu_custom_call.1} parent=0
    #allocation2 [shape = 'u8[8192]{0}', space=vmem, size = 0x2000, scoped, tag = 'input window, operand 0, single buffered']
    #allocation3 [shape = 's32[1]{0}', space=sflag, size = 0x4, scoped, tag = 'scoped memory for tpu_custom_call.1']
    #allocation4 [shape = 's32[1]{0}', space=sflag, size = 0x4, scoped, tag = 'scoped memory for tpu_custom_call.1']
    #allocation5 [shape = 'u8[8192]{0}', space=vmem, size = 0x2000, scoped, tag = 'input window, operand 1, single buffered']
    #allocation6 [shape = 's32[1]{0}', space=sflag, size = 0x4, scoped, tag = 'scoped memory for tpu_custom_call.1']
    #allocation7 [shape = 'u8[4096]{0}', space=vmem, size = 0x1000, scoped, tag = 'output window, operand 0, single buffered']
    %7 = vsyncpa [#allocation3], 0
    %8 = vsyncpa [#allocation6], 0
    %9 = vsyncpa [#allocation4], 0
    // Predicated region
    $region2: #{tpu_custom_call.1} parent=1 // pred_check
      _
    $region3: #{tpu_custom_call.1} parent=1 // pred_check_branch
      %11 = sbr.rel (0) target = $region5
    $region4: #{tpu_custom_call.1} parent=1 // pred_region
      %s13 = ssub.s32 256, 256
      %14 = vsyncadd [#allocation3], %s13
      %s15 = sshll.u32 [#allocation2], 4
      %s16 = int_to_ptr.vmem [resolvable:$true] %s15
      %21 = dma.hbm_to_vmem [thread:$0]  %s0, 256, %s16, [#allocation3], 128, 128, 8
    $region5: #{tpu_custom_call.1} parent=1 // pred_fallthru
      _
    // Predicated region
    $region6: #{tpu_custom_call.1} parent=1 // pred_check
      _
    $region7: #{tpu_custom_call.1} parent=1 // pred_check_branch
      %23 = sbr.rel (0) target = $region9
    $region8: #{tpu_custom_call.1} parent=1 // pred_region
      %s25 = ssub.s32 256, 256
      %26 = vsyncadd [#allocation6], %s25
      %s27 = sshll.u32 [#allocation5], 4
      %s28 = int_to_ptr.vmem [resolvable:$true] %s27
      %33 = dma.hbm_to_vmem [thread:$0]  %s1, 256, %s28, [#allocation6], 128, 128, 8
    $region9: #{tpu_custom_call.1} parent=1 // pred_fallthru
      _
    // Predicated region
    $region10: #{tpu_custom_call.1} parent=1 // pred_check
      _
    $region11: #{tpu_custom_call.1} parent=1 // pred_check_branch
      %35 = sbr.rel (0) target = $region13
    $region12: #{tpu_custom_call.1} parent=1 // pred_region
      %36 = dma.done [#allocation3], 256
    $region13: #{tpu_custom_call.1} parent=1 // pred_fallthru
      _
    // Predicated region
    $region14: #{tpu_custom_call.1} parent=1 // pred_check
      _
    $region15: #{tpu_custom_call.1} parent=1 // pred_check_branch
      %38 = sbr.rel (0) target = $region17
    $region16: #{tpu_custom_call.1} parent=1 // pred_region
      %39 = dma.done [#allocation6], 256
    $region17: #{tpu_custom_call.1} parent=1 // pred_fallthru
      _
    %v40 = vld [vmem:[#allocation2] sm:$0xff]
    %v41 = vld [vmem:[#allocation2 + $0x8] sm:$0xff]
    %v42 = vld [vmem:[#allocation5] sm:$0xff]
    %v43 = vld [vmem:[#allocation5 + $0x8] sm:$0xff]
    %v44 = vadd.f32 %v40, %v41
    %45 = vadd.xlane.f32.xlu0 %v44
    %v46 = vpop.xlane.xlu0 %45
    %v47 = vrot.slane %v46, 4
    %v48 = vadd.f32 %v46, %v47
    %v49 = vrot.slane %v48, 2
    %v50 = vadd.f32 %v48, %v49
    %v51 = vrot.slane %v50, 1
    %v52 = vadd.f32 %v50, %v51
    %s53 = vtos %v52
    %v54 = vadd.f32 %v42, %v43
    %55 = vadd.xlane.f32.xlu0 %v54
    %v56 = vpop.xlane.xlu0 %55
    %v57 = vrot.slane %v56, 4
    %v58 = vadd.f32 %v56, %v57
    %v59 = vrot.slane %v58, 2
    %v60 = vadd.f32 %v58, %v59
    %v61 = vrot.slane %v60, 1
    %v62 = vadd.f32 %v60, %v61
    %s63 = vtos %v62
    %v64 = vrcp.pop 2048.0
    %s65 = vtos %v64
    %s66 = smul.f32 %s53, %s65
    %v67 = vrcp.pop 2048.0
    %s68 = vtos %v67
    %s69 = smul.f32 %s63, %s68
    %v70 = vstv %s66
    %v71 = vsub.f32 %v40, %v70
    %v72 = vsub.f32 %v41, %v70
    %v73 = vstv %s69
    %v74 = vsub.f32 %v42, %v73
    %v75 = vsub.f32 %v43, %v73
    %v76 = vmul.f32 %v71, %v71
    %v77 = vmul.f32 %v72, %v72
    %v78 = vadd.f32 %v76, %v77
    %79 = vadd.xlane.f32.xlu0 %v78
    %v80 = vpop.xlane.xlu0 %79
    %v81 = vrot.slane %v80, 4
    %v82 = vadd.f32 %v80, %v81
    %v83 = vrot.slane %v82, 2
    %v84 = vadd.f32 %v82, %v83
    %v85 = vrot.slane %v84, 1
    %v86 = vadd.f32 %v84, %v85
    %s87 = vtos %v86
    %v88 = vmul.f32 %v74, %v74
    %v89 = vmul.f32 %v75, %v75
    %v90 = vadd.f32 %v88, %v89
    %91 = vadd.xlane.f32.xlu0 %v90
    %v92 = vpop.xlane.xlu0 %91
    %v93 = vrot.slane %v92, 4
    %v94 = vadd.f32 %v92, %v93
    %v95 = vrot.slane %v94, 2
    %v96 = vadd.f32 %v94, %v95
    %v97 = vrot.slane %v96, 1
    %v98 = vadd.f32 %v96, %v97
    %s99 = vtos %v98
    %v100 = vmul.f32 %v71, %v74
    %v101 = vmul.f32 %v72, %v75
    %v102 = vadd.f32 %v100, %v101
    %103 = vadd.xlane.f32.xlu0 %v102
    %v104 = vpop.xlane.xlu0 %103
    %v105 = vrot.slane %v104, 4
    %v106 = vadd.f32 %v104, %v105
    %v107 = vrot.slane %v106, 2
    %v108 = vadd.f32 %v106, %v107
    %v109 = vrot.slane %v108, 1
    %v110 = vadd.f32 %v108, %v109
    %s111 = vtos %v110
    %v112 = vlaneseq
    %v113 = vshrl.u32 %v112, 7
    %vm114 = vcmp.eq.s32.totalorder %v113, 0
    %vm115 = vcmp.eq.s32.totalorder %v113, 1
    %vm116 = vcmp.eq.s32.totalorder %v113, 2
    %vm117 = vcmp.eq.s32.totalorder %v113, 3
    %v118 = vstv %s99
    %v119 = vstv %s111
    %v120 = vsel %vm117, %v118, %v119
    %v121 = vstv %s87
    %v122 = vsel %vm116, %v121, %v120
    %v123 = vstv %s63
    %v124 = vsel %vm115, %v123, %v122
    %v125 = vstv %s53
    %v126 = vsel %vm114, %v125, %v124
    %127 = vst [vmem:[#allocation7] sm:$0xff] %v126
    // Predicated region
    $region18: #{tpu_custom_call.1} parent=1 // pred_check
      _
    $region19: #{tpu_custom_call.1} parent=1 // pred_check_branch
      %129 = sbr.rel (0) target = $region21
    $region20: #{tpu_custom_call.1} parent=1 // pred_region
      %s131 = ssub.s32 128, 128
      %132 = vsyncadd [#allocation4], %s131
      %s134 = sshll.u32 [#allocation7], 4
      %s135 = int_to_ptr.vmem [resolvable:$true] %s134
      %137 = dma.vmem_to_hbm [thread:$0]  %s135, 128, %s2, [#allocation4]
    $region21: #{tpu_custom_call.1} parent=1 // pred_fallthru
      _
    // Predicated region
    $region22: #{tpu_custom_call.1} parent=1 // pred_check
      _
    $region23: #{tpu_custom_call.1} parent=1 // pred_check_branch
      %139 = sbr.rel (0) target = $region25
    $region24: #{tpu_custom_call.1} parent=1 // pred_region
      %140 = dma.done [#allocation4], 128
    $region25: #{tpu_custom_call.1} parent=1 // pred_fallthru
      _
    %141 = vsyncpa [#allocation3], 1
    %142 = vsyncpa [#allocation6], 1
    %143 = vsyncpa [#allocation4], 1

</llo_original>
